<compile_context>
chip_gen: v7x
topology: tpu7x:2x2x1
jax: 0.10.0
libtpu: 0.0.40
codegen_flags: <defaults>
</compile_context>

<pallas_src>
import functools

import jax
import jax.numpy as jnp
from jax.experimental import pallas as pl
from jax.experimental.pallas import tpu as pltpu


def _round_up(x: int, m: int) -> int:
    return ((x + m - 1) // m) * m


def _linear_head_kernel(x_ref, wt_ref, o_ref):
    # x_ref : (TB, K)      f32 VMEM tile of features
    # wt_ref: (K, Npad)    f32 VMEM, pre-transposed weight (resident across grid)
    # o_ref : (TB, Npad)   f32 VMEM, lane-dense (Npad % 128 == 0) output tile
    # Pure MXU contraction on last axis of x / first axis of wt (no transpose).
    o_ref[...] = jnp.dot(
        x_ref[...], wt_ref[...], preferred_element_type=jnp.float32
    ).astype(o_ref.dtype)


@functools.partial(jax.jit, static_argnames=("batch_tile",))
def linear_second_model_forward(feat_pooled, weight, *, batch_tile: int = 256):
    """LinearSecondModel forward (inference): logits = dropout(x) @ W.T, no bias.

    feat_pooled: (B, nbFeat) float32
    weight:      (nbClass, nbFeat) float32   (torch nn.Linear layout)
    returns:     (B, nbClass) float32
    """
    x = feat_pooled.astype(jnp.float32)
    w = weight.astype(jnp.float32)

    B, K = x.shape
    N = w.shape[0]

    # --- layout prep (wrapper-side, one-time) -------------------------------
    # Pre-transpose W -> (K, N): contraction becomes a plain matmul, and N
    # (classes) lands on the lane axis.
    wt = w.T                                    # (K, N)

    # Pad class dim to >=128 lanes (unmasked stores, full MXU columns).
    N_pad = _round_up(max(N, 128), 128)
    if N_pad != N:
        wt = jnp.pad(wt, ((0, 0), (0, N_pad - N)))   # zero cols -> zero logits

    # Batch tiling: sublane-aligned tile, pad B so the grid divides evenly.
    TB = min(_round_up(batch_tile, 8), _round_up(B, 8))
    B_pad = _round_up(B, TB)
    if B_pad != B:
        x = jnp.pad(x, ((0, B_pad - B), (0, 0)))

    grid = (B_pad // TB,)

    out = pl.pallas_call(
        _linear_head_kernel,
        out_shape=jax.ShapeDtypeStruct((B_pad, N_pad), jnp.float32),
        grid=grid,
        in_specs=[
            # Batch-tiled activations (double-buffered across the grid).
            pl.BlockSpec((TB, K), lambda i: (i, 0)),
            # Whole weight, constant index_map -> stays resident in VMEM.
            pl.BlockSpec((K, N_pad), lambda i: (0, 0)),
        ],
        out_specs=pl.BlockSpec((TB, N_pad), lambda i: (i, 0)),
        compiler_params=pltpu.CompilerParams(
            dimension_semantics=("parallel",),
        ),
    )(x, wt)

    # Slice away batch/class padding.
    return out[:B, :N]


def linear_second_model_apply(ret_dict, weight, *, batch_tile: int = 256):
    """Dict-in / dict-out wrapper mirroring the PyTorch module's forward()."""
    out = dict(ret_dict)
    out["output"] = linear_second_model_forward(
        ret_dict["feat_pooled"], weight, batch_tile=batch_tile
    )
    return out


if __name__ == "__main__":
    # Small shapes consistent with the module: pooled features -> class logits.
    B, NB_FEAT, NB_CLASS = 8, 32, 8

    key = jax.random.PRNGKey(0)
    kx, kw = jax.random.split(key, 2)

    feat_pooled = jax.random.normal(kx, (B, NB_FEAT), dtype=jnp.float32)
    # nn.Linear-like uniform init, bias=False per the module.
    scale = 1.0 / jnp.sqrt(jnp.float32(NB_FEAT))
    weight = jax.random.uniform(
        kw, (NB_CLASS, NB_FEAT), minval=-scale, maxval=scale, dtype=jnp.float32
    )

    ret_dict = {"feat_pooled": feat_pooled}
    out_dict = linear_second_model_apply(ret_dict, weight)
    out = out_dict["output"]
    jax.block_until_ready(out)

    # Reference: dropout is identity at inference; linear has no bias.
    ref = feat_pooled @ weight.T
    assert out.shape == (B, NB_CLASS), out.shape
    assert jnp.allclose(out, ref, atol=1e-5, rtol=1e-5)

    print("KERNEL_OK")
</pallas_src>

<mosaic_0001>
module attributes {stable_mosaic.version = 11 : i64} {
  func.func @_linear_head_kernel(%arg0: i32, %arg1: memref<8x32xf32, #tpu.memory_space<vmem>>, %arg2: memref<32x128xf32, #tpu.memory_space<vmem>>, %arg3: memref<8x128xf32, #tpu.memory_space<vmem>>) attributes {dimension_semantics = [#tpu.dimension_semantics<parallel>], iteration_bounds = array<i64: 1>, scalar_prefetch = 0 : i64, scratch_operands = 0 : i64, tpu.core_type = #tpu.core_type<tc>, window_params = [{transform_indices = @transform_0, window_bounds = array<i64: 8, 32>}, {pipeline_mode = #tpu.pipeline_mode<synchronous>, transform_indices = @transform_1, window_bounds = array<i64: 32, 128>}, {transform_indices = @transform_2, window_bounds = array<i64: 8, 128>}]} {
    %c0 = arith.constant 0 : index
    %c0_0 = arith.constant 0 : index
    %0 = vector.load %arg1[%c0, %c0_0] : memref<8x32xf32, #tpu.memory_space<vmem>>, vector<8x32xf32>
    %c0_1 = arith.constant 0 : index
    %c0_2 = arith.constant 0 : index
    %1 = vector.load %arg2[%c0_1, %c0_2] : memref<32x128xf32, #tpu.memory_space<vmem>>, vector<32x128xf32>
    %cst = arith.constant dense<0.000000e+00> : vector<8x128xf32>
    %2 = tpu.matmul %0, %1, %cst {dimension_numbers = #tpu.dot_dimension_numbers<[1], [0], [0], [1], [0, 0, 1, 1], [], []>} : vector<8x32xf32>, vector<32x128xf32>, vector<8x128xf32> -> vector<8x128xf32>
    %c0_3 = arith.constant 0 : index
    %c0_4 = arith.constant 0 : index
    %3 = vector.load %arg3[%c0_3, %c0_4] : memref<8x128xf32, #tpu.memory_space<vmem>>, vector<8x128xf32>
    tpu.vector_store %arg3[%c0_3, %c0_4], %2 {strides = array<i32>} : memref<8x128xf32, #tpu.memory_space<vmem>>, vector<8x128xf32>,
    return
  }
  func.func @transform_0(%arg0: i32) -> (i32, i32) {
    %c0_i32 = arith.constant 0 : i32
    %c0_i32_0 = arith.constant 0 : i32
    return %arg0, %c0_i32 : i32, i32
  }
  func.func @transform_1(%arg0: i32) -> (i32, i32) {
    %c0_i32 = arith.constant 0 : i32
    %c0_i32_0 = arith.constant 0 : i32
    %c0_i32_1 = arith.constant 0 : i32
    return %c0_i32, %c0_i32_0 : i32, i32
  }
  func.func @transform_2(%arg0: i32) -> (i32, i32) {
    %c0_i32 = arith.constant 0 : i32
    %c0_i32_0 = arith.constant 0 : i32
    return %arg0, %c0_i32 : i32, i32
  }
}

</mosaic_0001>

<llo_original>
// kernel: linear_second_model_forward.1
$region0: #{linear_second_model_forward.1}
  #allocation0 [shape = 'u32[]', space=smem, size = 0x4, offset = 0x4, fixed_abs, tag = 'smem constant byte address 0x4 - core index']
  #allocation1 [shape = 'u32[144,128]{1,0:T(1,128)}', space=vmem, size = 0x12000, scoped, tag = 'internal scratch']
  %s0 = inlined_call_operand.vmem [shape: f32[8,32], index: 0, kind: input, shape index: {}]
  %s1 = inlined_call_operand.vmem [shape: f32[32,128], index: 1, kind: input, shape index: {}]
  %s2 = inlined_call_operand.hbm [shape: f32[8,128], index: 2, kind: output, shape index: {}]
  %s3 = sld [smem:[#allocation0]]
  $region18: #{linear_second_model_forward.1} parent=0
    _
  %s5 = ssub.s32 1, %s3
  %s6 = scalar_select 0, %s5, %s3
  $region1: #{linear_second_model_forward.1} parent=0
    #allocation2 [shape = 'u8[4096]{0}', space=vmem, size = 0x1000, scoped, tag = 'output window, operand 0, single buffered']
    #allocation3 [shape = 's32[1]{0}', space=sflag, size = 0x4, scoped, tag = 'scoped memory for linear_second_model_forward.1']
    %7 = vsyncpa [#allocation3], 0
    // Predicated region
    $region2: #{linear_second_model_forward.1} parent=1 // pred_check
      _
    $region3: #{linear_second_model_forward.1} parent=1 // pred_check_branch
      %9 = sbr.rel (0) target = $region5
    $region4: #{linear_second_model_forward.1} parent=1 // pred_region
      _
    $region5: #{linear_second_model_forward.1} parent=1 // pred_fallthru
      _
    // Predicated region
    $region6: #{linear_second_model_forward.1} parent=1 // pred_check
      _
    $region7: #{linear_second_model_forward.1} parent=1 // pred_check_branch
      %11 = sbr.rel (0) target = $region9
    $region8: #{linear_second_model_forward.1} parent=1 // pred_region
      _
    $region9: #{linear_second_model_forward.1} parent=1 // pred_fallthru
      _
    %v12 = vld [vmem:[%s0] sm:$0xff]
    %v13 = vld [vmem:[%s1] sm:$0xff]
    %v14 = vld [vmem:[%s1 + $0x8] sm:$0xff]
    %v15 = vld [vmem:[%s1 + $0x10] sm:$0xff]
    %v16 = vld [vmem:[%s1 + $0x18] sm:$0xff]
    %vm17 = vcmask 261120
    %v19 = vsel %vm17, %v12, 0
    %21 = vmatprep.subr.mxu0 0.0
    %22 = vmatpush1.msra.mxu0 %v13
    %23 = vmatprep.subr.mxu0 0.0
    %24 = vmatpush1.msra.mxu0 %v14
    %25 = vmatprep.subr.mxu0 0.0
    %26 = vmatpush1.msra.mxu0 %v15
    %27 = vmatprep.subr.mxu0 0.0
    %28 = vmatpush1.msra.mxu0 %v16
    %29 = vmatprep.subr.mxu0 0.0
    %30 = vmatpush1.msra.mxu0 0.0
    %31 = vmatprep.subr.mxu0 0.0
    %32 = vmatpush1.msra.mxu0 0.0
    %33 = vmatprep.subr.mxu0 0.0
    %34 = vmatpush1.msra.mxu0 0.0
    %35 = vmatprep.subr.mxu0 0.0
    %36 = vmatpush1.msra.mxu0 0.0
    %37 = vmatprep.subr.mxu0 0.0
    %38 = vmatpush1.msra.mxu0 0.0
    %39 = vmatprep.subr.mxu0 0.0
    %40 = vmatpush1.msra.mxu0 0.0
    %41 = vmatprep.subr.mxu0 0.0
    %42 = vmatpush1.msra.mxu0 0.0
    %43 = vmatprep.subr.mxu0 0.0
    %44 = vmatpush1.msra.mxu0 0.0
    %45 = vmatprep.subr.mxu0 0.0
    %46 = vmatpush1.msra.mxu0 0.0
    %47 = vmatprep.subr.mxu0 0.0
    %48 = vmatpush1.msra.mxu0 0.0
    %49 = vmatprep.subr.mxu0 0.0
    %50 = vmatpush1.msra.mxu0 0.0
    %51 = vmatprep.subr.mxu0 0.0
    %52 = vmatpush1.msra.mxu0 0.0
    %53 = vmatprep.subr.mxu0 0.0
    %54 = vmatpush1.msra.mxu0 0.0
    %55 = vmatprep.subr.mxu0 0.0
    %56 = vmatpush1.msra.mxu0 0.0
    %57 = vmatprep.subr.mxu0 0.0
    %58 = vmatpush1.msra.mxu0 0.0
    %59 = vmatprep.subr.mxu0 0.0
    %60 = vmatpush1.msra.mxu0 0.0
    %61 = vmatprep.subr.mxu0 0.0
    %62 = vmatpush1.msra.mxu0 0.0
    %63 = vmatprep.subr.mxu0 0.0
    %64 = vmatpush1.msra.mxu0 0.0
    %65 = vmatprep.subr.mxu0 0.0
    %66 = vmatpush1.msra.mxu0 0.0
    %67 = vmatprep.subr.mxu0 0.0
    %68 = vmatpush1.msra.mxu0 0.0
    %69 = vmatprep.subr.mxu0 0.0
    %70 = vmatpush1.msra.mxu0 0.0
    %71 = vmatprep.subr.mxu0 0.0
    %72 = vmatpush1.msra.mxu0 0.0
    %73 = vmatprep.subr.mxu0 0.0
    %74 = vmatpush1.msra.mxu0 0.0
    %75 = vmatprep.subr.mxu0 0.0
    %76 = vmatpush1.msra.mxu0 0.0
    %77 = vmatprep.subr.mxu0 0.0
    %78 = vmatpush1.msra.mxu0 0.0
    %79 = vmatprep.subr.mxu0 0.0
    %80 = vmatpush1.msra.mxu0 0.0
    %81 = vmatprep.subr.mxu0 0.0
    %82 = vmatpush1.msra.mxu0 0.0
    %83 = vmatprep.subr.mxu0 0.0
    %84 = vmatpush1.msra.mxu0 0.0
    %85 = vmatprep.mubr.f32.mxu0 0.0
    %86 = vmatmul.mubr.f32.gmra.mrb[0].mxu0 %v19
    %v87 = vpop.f32.mrb[0].mxu0
    %v88 = vadd.f32 0.0, %v87
    %v89 = vpop.f32.mrb[0].mxu0
    %90 = vdwg.mxu0
    %91 = vst [vmem:[#allocation2] sm:$0xff] %v88
    // Predicated region
    $region10: #{linear_second_model_forward.1} parent=1 // pred_check
      _
    $region11: #{linear_second_model_forward.1} parent=1 // pred_check_branch
      %93 = sbr.rel (0) target = $region13
    $region12: #{linear_second_model_forward.1} parent=1 // pred_region
      %s95 = ssub.s32 128, 128
      %96 = vsyncadd [#allocation3], %s95
      %s98 = sshll.u32 [#allocation2], 4
      %s99 = int_to_ptr.vmem [resolvable:$true] %s98
      %101 = dma.vmem_to_hbm [thread:$0]  %s99, 128, %s2, [#allocation3]
    $region13: #{linear_second_model_forward.1} parent=1 // pred_fallthru
      _
    // Predicated region
    $region14: #{linear_second_model_forward.1} parent=1 // pred_check
      _
    $region15: #{linear_second_model_forward.1} parent=1 // pred_check_branch
      %103 = sbr.rel (0) target = $region17
    $region16: #{linear_second_model_forward.1} parent=1 // pred_region
      %104 = dma.done [#allocation3], 128
    $region17: #{linear_second_model_forward.1} parent=1 // pred_fallthru
      _
    %105 = vsyncpa [#allocation3], 1

</llo_original>
